<compile_context>
chip_gen: v7x
topology: tpu7x:2x2x1
jax: 0.10.0
libtpu: 0.0.40
codegen_flags: <defaults>
</compile_context>

<pallas_src>
import jax
import jax.numpy as jnp
from jax.experimental import pallas as pl
from jax.experimental.pallas import tpu as pltpu


def _make_kernel(Cin, H, W, K, NHW, CKK, CKK_PAD):
    pad = K // 2

    def kernel(w_ref, x_ref, yy_ref, xx_ref, o_ref, patches_ref):
        # w_ref:        (Cout, CKK_PAD)  filter, columns ordered (kh, kw, ci), zero-padded
        # x_ref:        (Cin, NHW)       input, lane j = n*H*W + y*W + x
        # yy_ref/xx_ref:(Cin, NHW) int32 per-lane (y, x) coordinates inside one image
        # o_ref:        (Cout, NHW)      lane-dense output
        # patches_ref:  (CKK_PAD, NHW)   VMEM scratch: in-kernel-rebuilt im2col
        xv = x_ref[...]
        yy = yy_ref[...]
        xx = xx_ref[...]

        for kh in range(K):
            for kw in range(K):
                dy = kh - pad
                dx = kw - pad
                t = kh * K + kw
                if dy == 0 and dx == 0:
                    tap = xv
                else:
                    d = dy * W + dx            # static lane offset of this tap
                    # shifted[:, j] = x[:, j + d]; the roll wraps across image /
                    # batch boundaries only at lanes the mask zeroes out.
                    shifted = pltpu.roll(xv, (-d) % NHW, axis=1)
                    valid = ((yy >= -dy) & (yy < H - dy)
                             & (xx >= -dx) & (xx < W - dx))
                    tap = jnp.where(valid, shifted, 0.0)
                patches_ref[pl.ds(t * Cin, Cin), :] = tap

        # Zero the sublane-alignment pad rows of the contraction axis.
        if CKK_PAD > CKK:
            patches_ref[pl.ds(CKK, CKK_PAD - CKK), :] = jnp.zeros(
                (CKK_PAD - CKK, NHW), jnp.float32)

        o_ref[...] = jnp.dot(
            w_ref[...], patches_ref[...],
            preferred_element_type=jnp.float32).astype(o_ref.dtype)

    return kernel


def gauge_equivariant_conv2d(x_nchw, base_filter, group_size=8):
    """Forward of GaugeEquivariantConv2d.

    x_nchw:      (N, Cin, H, W)    float32, PyTorch NCHW
    base_filter: (Cout, Cin, K, K) float32, PyTorch OIHW conv weight
    Returns (N, Cout, H, W): the mean over the C8 group of identical conv outputs,
    i.e. exactly one same-padded conv (see header).  `group_size` only
    parameterizes the (collapsed) group loop.
    """
    N, Cin, H, W = x_nchw.shape
    Cout, Cin_w, K, K2 = base_filter.shape
    assert Cin_w == Cin and K == K2
    assert K % 2 == 1, "padding=K//2 is 'same' only for odd K"
    HW = H * W
    NHW = N * HW
    CKK = Cin * K * K
    CKK_PAD = ((CKK + 7) // 8) * 8            # contraction axis -> sublane multiple

    assert NHW % 128 == 0, "N*H*W must be a multiple of 128 lanes"
    vmem_bytes = 4 * (CKK_PAD * NHW
                      + 2 * (3 * max(Cin, 8) * NHW + Cout * NHW + Cout * 128))
    assert vmem_bytes < 16 * 1024 * 1024, "shape too large for single-block kernel"
    # TODO(synk): if H*W*Cin scales up, add a grid axis over NHW with a
    # multiple-of-128 lane block (plus a W-lane halo for the rolled taps) instead
    # of raising vmem_limit_bytes (v7x has only 64 MiB physical VMEM).

    # Tiny wrapper-side layout plumbing (8 KiB x, 1.2 KiB w, 16 KiB out):
    x_flat = jnp.transpose(x_nchw, (1, 0, 2, 3)).reshape(Cin, NHW)
    w_flat = jnp.transpose(base_filter, (0, 2, 3, 1)).reshape(Cout, CKK)
    w_pad = jnp.pad(w_flat, ((0, 0), (0, CKK_PAD - CKK)))

    # Per-lane (y, x) coordinates inside one image — used for the in-kernel edge
    # masks (avoids vector integer div/mod inside the kernel).
    yy_row = jnp.repeat(jnp.arange(H, dtype=jnp.int32), W)
    xx_row = jnp.tile(jnp.arange(W, dtype=jnp.int32), H)
    yy = jnp.broadcast_to(jnp.tile(yy_row, N)[None, :], (Cin, NHW))
    xx = jnp.broadcast_to(jnp.tile(xx_row, N)[None, :], (Cin, NHW))

    kernel = _make_kernel(Cin, H, W, K, NHW, CKK, CKK_PAD)
    out = pl.pallas_call(
        kernel,
        out_shape=jax.ShapeDtypeStruct((Cout, NHW), x_nchw.dtype),
        grid=(1,),                                              # single step
        in_specs=[
            pl.BlockSpec((Cout, CKK_PAD), lambda i: (0, 0)),
            pl.BlockSpec((Cin, NHW), lambda i: (0, 0)),
            pl.BlockSpec((Cin, NHW), lambda i: (0, 0)),
            pl.BlockSpec((Cin, NHW), lambda i: (0, 0)),
        ],
        out_specs=pl.BlockSpec((Cout, NHW), lambda i: (0, 0)),
        scratch_shapes=[pltpu.VMEM((CKK_PAD, NHW), jnp.float32)],
    )(w_pad, x_flat, yy, xx)

    # (Cout, N*H*W) -> (N, Cout, H, W): 16 KiB transpose in the wrapper.
    return jnp.transpose(out.reshape(Cout, N, H, W), (1, 0, 2, 3))


def _reference_conv(x_nchw, base_filter):
    # Pure-JAX reference (XLA conv) for correctness check.
    p = base_filter.shape[-1] // 2
    return jax.lax.conv_general_dilated(
        x_nchw, base_filter, window_strides=(1, 1),
        padding=((p, p), (p, p)),
        dimension_numbers=("NCHW", "OIHW", "NCHW"))


if __name__ == "__main__":
    # Module config: in_channels=4, out_channels=8, kernel_size=3, group_size=8
    N, Cin, H, W = 2, 4, 16, 16
    Cout, K, group_size = 8, 3, 8

    key = jax.random.PRNGKey(0)
    kx, kweight = jax.random.split(key)
    x = jax.random.normal(kx, (N, Cin, H, W), dtype=jnp.float32)
    # torch.randn(...) * 0.02 equivalent, deterministic in-script init.
    base_filter = jax.random.normal(kweight, (Cout, Cin, K, K), dtype=jnp.float32) * 0.02

    out = jax.block_until_ready(
        gauge_equivariant_conv2d(x, base_filter, group_size=group_size))
    ref = jax.block_until_ready(_reference_conv(x, base_filter))

    assert out.shape == (N, Cout, H, W)
    assert jnp.allclose(out, ref, atol=1e-5, rtol=1e-5), "mismatch vs reference conv"
    print("KERNEL_OK")
</pallas_src>

<mosaic_0001>
module attributes {stable_mosaic.version = 11 : i64} {
  func.func @kernel(%arg0: i32, %arg1: memref<8x40xf32, #tpu.memory_space<vmem>>, %arg2: memref<4x512xf32, #tpu.memory_space<vmem>>, %arg3: memref<4x512xi32, #tpu.memory_space<vmem>>, %arg4: memref<4x512xi32, #tpu.memory_space<vmem>>, %arg5: memref<8x512xf32, #tpu.memory_space<vmem>>, %arg6: memref<40x512xf32, #tpu.memory_space<vmem>>) attributes {dimension_semantics = [#tpu.dimension_semantics<arbitrary>], iteration_bounds = array<i64: 1>, scalar_prefetch = 0 : i64, scratch_operands = 1 : i64, tpu.core_type = #tpu.core_type<tc>, window_params = [{pipeline_mode = #tpu.pipeline_mode<synchronous>, transform_indices = @transform_0, window_bounds = array<i64: 8, 40>}, {pipeline_mode = #tpu.pipeline_mode<synchronous>, transform_indices = @transform_1, window_bounds = array<i64: 4, 512>}, {pipeline_mode = #tpu.pipeline_mode<synchronous>, transform_indices = @transform_2, window_bounds = array<i64: 4, 512>}, {pipeline_mode = #tpu.pipeline_mode<synchronous>, transform_indices = @transform_3, window_bounds = array<i64: 4, 512>}, {pipeline_mode = #tpu.pipeline_mode<synchronous>, transform_indices = @transform_4, window_bounds = array<i64: 8, 512>}]} {
    %c0 = arith.constant 0 : index
    %c0_0 = arith.constant 0 : index
    %0 = vector.load %arg2[%c0, %c0_0] : memref<4x512xf32, #tpu.memory_space<vmem>>, vector<4x512xf32>
    %c0_1 = arith.constant 0 : index
    %c0_2 = arith.constant 0 : index
    %1 = vector.load %arg3[%c0_1, %c0_2] : memref<4x512xi32, #tpu.memory_space<vmem>>, vector<4x512xi32>
    %c0_3 = arith.constant 0 : index
    %c0_4 = arith.constant 0 : index
    %2 = vector.load %arg4[%c0_3, %c0_4] : memref<4x512xi32, #tpu.memory_space<vmem>>, vector<4x512xi32>
    %c17_i32 = arith.constant 17 : i32
    %3 = tpu.dynamic_rotate %0 by %c17_i32 dim 1 : vector<4x512xf32>, i32 -> vector<4x512xf32>
    %c1_i32 = arith.constant 1 : i32
    %4 = vector.broadcast %c1_i32 : i32 to vector<4x512xi32>
    %5 = arith.cmpi sge, %1, %4 : vector<4x512xi32>
    %c17_i32_5 = arith.constant 17 : i32
    %6 = vector.broadcast %c17_i32_5 : i32 to vector<4x512xi32>
    %7 = arith.cmpi slt, %1, %6 : vector<4x512xi32>
    %8 = arith.andi %5, %7 : vector<4x512xi1>
    %c1_i32_6 = arith.constant 1 : i32
    %9 = vector.broadcast %c1_i32_6 : i32 to vector<4x512xi32>
    %10 = arith.cmpi sge, %2, %9 : vector<4x512xi32>
    %11 = arith.andi %8, %10 : vector<4x512xi1>
    %c17_i32_7 = arith.constant 17 : i32
    %12 = vector.broadcast %c17_i32_7 : i32 to vector<4x512xi32>
    %13 = arith.cmpi slt, %2, %12 : vector<4x512xi32>
    %14 = arith.andi %11, %13 : vector<4x512xi1>
    %cst = arith.constant 0.000000e+00 : f32
    %15 = vector.broadcast %cst : f32 to vector<4x512xf32>
    %16 = arith.select %14, %3, %15 : vector<4x512xi1>, vector<4x512xf32>
    %c0_8 = arith.constant 0 : index
    %c0_9 = arith.constant 0 : index
    %17 = vector.load %arg6[%c0_8, %c0_9] : memref<40x512xf32, #tpu.memory_space<vmem>>, vector<4x512xf32>
    tpu.vector_store %arg6[%c0_8, %c0_9], %16 {strides = array<i32>} : memref<40x512xf32, #tpu.memory_space<vmem>>, vector<4x512xf32>,
    %c16_i32 = arith.constant 16 : i32
    %18 = tpu.dynamic_rotate %0 by %c16_i32 dim 1 : vector<4x512xf32>, i32 -> vector<4x512xf32>
    %c1_i32_10 = arith.constant 1 : i32
    %19 = vector.broadcast %c1_i32_10 : i32 to vector<4x512xi32>
    %20 = arith.cmpi sge, %1, %19 : vector<4x512xi32>
    %c17_i32_11 = arith.constant 17 : i32
    %21 = vector.broadcast %c17_i32_11 : i32 to vector<4x512xi32>
    %22 = arith.cmpi slt, %1, %21 : vector<4x512xi32>
    %23 = arith.andi %20, %22 : vector<4x512xi1>
    %c0_i32 = arith.constant 0 : i32
    %24 = vector.broadcast %c0_i32 : i32 to vector<4x512xi32>
    %25 = arith.cmpi sge, %2, %24 : vector<4x512xi32>
    %26 = arith.andi %23, %25 : vector<4x512xi1>
    %c16_i32_12 = arith.constant 16 : i32
    %27 = vector.broadcast %c16_i32_12 : i32 to vector<4x512xi32>
    %28 = arith.cmpi slt, %2, %27 : vector<4x512xi32>
    %29 = arith.andi %26, %28 : vector<4x512xi1>
    %cst_13 = arith.constant 0.000000e+00 : f32
    %30 = vector.broadcast %cst_13 : f32 to vector<4x512xf32>
    %31 = arith.select %29, %18, %30 : vector<4x512xi1>, vector<4x512xf32>
    %c4 = arith.constant 4 : index
    %c0_14 = arith.constant 0 : index
    %32 = vector.load %arg6[%c4, %c0_14] : memref<40x512xf32, #tpu.memory_space<vmem>>, vector<4x512xf32>
    tpu.vector_store %arg6[%c4, %c0_14], %31 {strides = array<i32>} : memref<40x512xf32, #tpu.memory_space<vmem>>, vector<4x512xf32>,
    %c15_i32 = arith.constant 15 : i32
    %33 = tpu.dynamic_rotate %0 by %c15_i32 dim 1 : vector<4x512xf32>, i32 -> vector<4x512xf32>
    %c1_i32_15 = arith.constant 1 : i32
    %34 = vector.broadcast %c1_i32_15 : i32 to vector<4x512xi32>
    %35 = arith.cmpi sge, %1, %34 : vector<4x512xi32>
    %c17_i32_16 = arith.constant 17 : i32
    %36 = vector.broadcast %c17_i32_16 : i32 to vector<4x512xi32>
    %37 = arith.cmpi slt, %1, %36 : vector<4x512xi32>
    %38 = arith.andi %35, %37 : vector<4x512xi1>
    %c-1_i32 = arith.constant -1 : i32
    %39 = vector.broadcast %c-1_i32 : i32 to vector<4x512xi32>
    %40 = arith.cmpi sge, %2, %39 : vector<4x512xi32>
    %41 = arith.andi %38, %40 : vector<4x512xi1>
    %c15_i32_17 = arith.constant 15 : i32
    %42 = vector.broadcast %c15_i32_17 : i32 to vector<4x512xi32>
    %43 = arith.cmpi slt, %2, %42 : vector<4x512xi32>
    %44 = arith.andi %41, %43 : vector<4x512xi1>
    %cst_18 = arith.constant 0.000000e+00 : f32
    %45 = vector.broadcast %cst_18 : f32 to vector<4x512xf32>
    %46 = arith.select %44, %33, %45 : vector<4x512xi1>, vector<4x512xf32>
    %c8 = arith.constant 8 : index
    %c0_19 = arith.constant 0 : index
    %47 = vector.load %arg6[%c8, %c0_19] : memref<40x512xf32, #tpu.memory_space<vmem>>, vector<4x512xf32>
    tpu.vector_store %arg6[%c8, %c0_19], %46 {strides = array<i32>} : memref<40x512xf32, #tpu.memory_space<vmem>>, vector<4x512xf32>,
    %c1_i32_20 = arith.constant 1 : i32
    %48 = tpu.dynamic_rotate %0 by %c1_i32_20 dim 1 : vector<4x512xf32>, i32 -> vector<4x512xf32>
    %c0_i32_21 = arith.constant 0 : i32
    %49 = vector.broadcast %c0_i32_21 : i32 to vector<4x512xi32>
    %50 = arith.cmpi sge, %1, %49 : vector<4x512xi32>
    %c16_i32_22 = arith.constant 16 : i32
    %51 = vector.broadcast %c16_i32_22 : i32 to vector<4x512xi32>
    %52 = arith.cmpi slt, %1, %51 : vector<4x512xi32>
    %53 = arith.andi %50, %52 : vector<4x512xi1>
    %c1_i32_23 = arith.constant 1 : i32
    %54 = vector.broadcast %c1_i32_23 : i32 to vector<4x512xi32>
    %55 = arith.cmpi sge, %2, %54 : vector<4x512xi32>
    %56 = arith.andi %53, %55 : vector<4x512xi1>
    %c17_i32_24 = arith.constant 17 : i32
    %57 = vector.broadcast %c17_i32_24 : i32 to vector<4x512xi32>
    %58 = arith.cmpi slt, %2, %57 : vector<4x512xi32>
    %59 = arith.andi %56, %58 : vector<4x512xi1>
    %cst_25 = arith.constant 0.000000e+00 : f32
    %60 = vector.broadcast %cst_25 : f32 to vector<4x512xf32>
    %61 = arith.select %59, %48, %60 : vector<4x512xi1>, vector<4x512xf32>
    %c12 = arith.constant 12 : index
    %c0_26 = arith.constant 0 : index
    %62 = vector.load %arg6[%c12, %c0_26] : memref<40x512xf32, #tpu.memory_space<vmem>>, vector<4x512xf32>
    tpu.vector_store %arg6[%c12, %c0_26], %61 {strides = array<i32>} : memref<40x512xf32, #tpu.memory_space<vmem>>, vector<4x512xf32>,
    %c16 = arith.constant 16 : index
    %c0_27 = arith.constant 0 : index
    %63 = vector.load %arg6[%c16, %c0_27] : memref<40x512xf32, #tpu.memory_space<vmem>>, vector<4x512xf32>
    tpu.vector_store %arg6[%c16, %c0_27], %0 {strides = array<i32>} : memref<40x512xf32, #tpu.memory_space<vmem>>, vector<4x512xf32>,
    %c511_i32 = arith.constant 511 : i32
    %64 = tpu.dynamic_rotate %0 by %c511_i32 dim 1 : vector<4x512xf32>, i32 -> vector<4x512xf32>
    %c0_i32_28 = arith.constant 0 : i32
    %65 = vector.broadcast %c0_i32_28 : i32 to vector<4x512xi32>
    %66 = arith.cmpi sge, %1, %65 : vector<4x512xi32>
    %c16_i32_29 = arith.constant 16 : i32
    %67 = vector.broadcast %c16_i32_29 : i32 to vector<4x512xi32>
    %68 = arith.cmpi slt, %1, %67 : vector<4x512xi32>
    %69 = arith.andi %66, %68 : vector<4x512xi1>
    %c-1_i32_30 = arith.constant -1 : i32
    %70 = vector.broadcast %c-1_i32_30 : i32 to vector<4x512xi32>
    %71 = arith.cmpi sge, %2, %70 : vector<4x512xi32>
    %72 = arith.andi %69, %71 : vector<4x512xi1>
    %c15_i32_31 = arith.constant 15 : i32
    %73 = vector.broadcast %c15_i32_31 : i32 to vector<4x512xi32>
    %74 = arith.cmpi slt, %2, %73 : vector<4x512xi32>
    %75 = arith.andi %72, %74 : vector<4x512xi1>
    %cst_32 = arith.constant 0.000000e+00 : f32
    %76 = vector.broadcast %cst_32 : f32 to vector<4x512xf32>
    %77 = arith.select %75, %64, %76 : vector<4x512xi1>, vector<4x512xf32>
    %c20 = arith.constant 20 : index
    %c0_33 = arith.constant 0 : index
    %78 = vector.load %arg6[%c20, %c0_33] : memref<40x512xf32, #tpu.memory_space<vmem>>, vector<4x512xf32>
    tpu.vector_store %arg6[%c20, %c0_33], %77 {strides = array<i32>} : memref<40x512xf32, #tpu.memory_space<vmem>>, vector<4x512xf32>,
    %c497_i32 = arith.constant 497 : i32
    %79 = tpu.dynamic_rotate %0 by %c497_i32 dim 1 : vector<4x512xf32>, i32 -> vector<4x512xf32>
    %c-1_i32_34 = arith.constant -1 : i32
    %80 = vector.broadcast %c-1_i32_34 : i32 to vector<4x512xi32>
    %81 = arith.cmpi sge, %1, %80 : vector<4x512xi32>
    %c15_i32_35 = arith.constant 15 : i32
    %82 = vector.broadcast %c15_i32_35 : i32 to vector<4x512xi32>
    %83 = arith.cmpi slt, %1, %82 : vector<4x512xi32>
    %84 = arith.andi %81, %83 : vector<4x512xi1>
    %c1_i32_36 = arith.constant 1 : i32
    %85 = vector.broadcast %c1_i32_36 : i32 to vector<4x512xi32>
    %86 = arith.cmpi sge, %2, %85 : vector<4x512xi32>
    %87 = arith.andi %84, %86 : vector<4x512xi1>
    %c17_i32_37 = arith.constant 17 : i32
    %88 = vector.broadcast %c17_i32_37 : i32 to vector<4x512xi32>
    %89 = arith.cmpi slt, %2, %88 : vector<4x512xi32>
    %90 = arith.andi %87, %89 : vector<4x512xi1>
    %cst_38 = arith.constant 0.000000e+00 : f32
    %91 = vector.broadcast %cst_38 : f32 to vector<4x512xf32>
    %92 = arith.select %90, %79, %91 : vector<4x512xi1>, vector<4x512xf32>
    %c24 = arith.constant 24 : index
    %c0_39 = arith.constant 0 : index
    %93 = vector.load %arg6[%c24, %c0_39] : memref<40x512xf32, #tpu.memory_space<vmem>>, vector<4x512xf32>
    tpu.vector_store %arg6[%c24, %c0_39], %92 {strides = array<i32>} : memref<40x512xf32, #tpu.memory_space<vmem>>, vector<4x512xf32>,
    %c496_i32 = arith.constant 496 : i32
    %94 = tpu.dynamic_rotate %0 by %c496_i32 dim 1 : vector<4x512xf32>, i32 -> vector<4x512xf32>
    %c-1_i32_40 = arith.constant -1 : i32
    %95 = vector.broadcast %c-1_i32_40 : i32 to vector<4x512xi32>
    %96 = arith.cmpi sge, %1, %95 : vector<4x512xi32>
    %c15_i32_41 = arith.constant 15 : i32
    %97 = vector.broadcast %c15_i32_41 : i32 to vector<4x512xi32>
    %98 = arith.cmpi slt, %1, %97 : vector<4x512xi32>
    %99 = arith.andi %96, %98 : vector<4x512xi1>
    %c0_i32_42 = arith.constant 0 : i32
    %100 = vector.broadcast %c0_i32_42 : i32 to vector<4x512xi32>
    %101 = arith.cmpi sge, %2, %100 : vector<4x512xi32>
    %102 = arith.andi %99, %101 : vector<4x512xi1>
    %c16_i32_43 = arith.constant 16 : i32
    %103 = vector.broadcast %c16_i32_43 : i32 to vector<4x512xi32>
    %104 = arith.cmpi slt, %2, %103 : vector<4x512xi32>
    %105 = arith.andi %102, %104 : vector<4x512xi1>
    %cst_44 = arith.constant 0.000000e+00 : f32
    %106 = vector.broadcast %cst_44 : f32 to vector<4x512xf32>
    %107 = arith.select %105, %94, %106 : vector<4x512xi1>, vector<4x512xf32>
    %c28 = arith.constant 28 : index
    %c0_45 = arith.constant 0 : index
    %108 = vector.load %arg6[%c28, %c0_45] : memref<40x512xf32, #tpu.memory_space<vmem>>, vector<4x512xf32>
    tpu.vector_store %arg6[%c28, %c0_45], %107 {strides = array<i32>} : memref<40x512xf32, #tpu.memory_space<vmem>>, vector<4x512xf32>,
    %c495_i32 = arith.constant 495 : i32
    %109 = tpu.dynamic_rotate %0 by %c495_i32 dim 1 : vector<4x512xf32>, i32 -> vector<4x512xf32>
    %c-1_i32_46 = arith.constant -1 : i32
    %110 = vector.broadcast %c-1_i32_46 : i32 to vector<4x512xi32>
    %111 = arith.cmpi sge, %1, %110 : vector<4x512xi32>
    %c15_i32_47 = arith.constant 15 : i32
    %112 = vector.broadcast %c15_i32_47 : i32 to vector<4x512xi32>
    %113 = arith.cmpi slt, %1, %112 : vector<4x512xi32>
    %114 = arith.andi %111, %113 : vector<4x512xi1>
    %c-1_i32_48 = arith.constant -1 : i32
    %115 = vector.broadcast %c-1_i32_48 : i32 to vector<4x512xi32>
    %116 = arith.cmpi sge, %2, %115 : vector<4x512xi32>
    %117 = arith.andi %114, %116 : vector<4x512xi1>
    %c15_i32_49 = arith.constant 15 : i32
    %118 = vector.broadcast %c15_i32_49 : i32 to vector<4x512xi32>
    %119 = arith.cmpi slt, %2, %118 : vector<4x512xi32>
    %120 = arith.andi %117, %119 : vector<4x512xi1>
    %cst_50 = arith.constant 0.000000e+00 : f32
    %121 = vector.broadcast %cst_50 : f32 to vector<4x512xf32>
    %122 = arith.select %120, %109, %121 : vector<4x512xi1>, vector<4x512xf32>
    %c32 = arith.constant 32 : index
    %c0_51 = arith.constant 0 : index
    %123 = vector.load %arg6[%c32, %c0_51] : memref<40x512xf32, #tpu.memory_space<vmem>>, vector<4x512xf32>
    tpu.vector_store %arg6[%c32, %c0_51], %122 {strides = array<i32>} : memref<40x512xf32, #tpu.memory_space<vmem>>, vector<4x512xf32>,
    %cst_52 = arith.constant 0.000000e+00 : f32
    %124 = vector.broadcast %cst_52 : f32 to vector<4x512xf32>
    %c36 = arith.constant 36 : index
    %c0_53 = arith.constant 0 : index
    %125 = vector.load %arg6[%c36, %c0_53] : memref<40x512xf32, #tpu.memory_space<vmem>>, vector<4x512xf32>
    tpu.vector_store %arg6[%c36, %c0_53], %124 {strides = array<i32>} : memref<40x512xf32, #tpu.memory_space<vmem>>, vector<4x512xf32>,
    %c0_54 = arith.constant 0 : index
    %c0_55 = arith.constant 0 : index
    %126 = vector.load %arg1[%c0_54, %c0_55] : memref<8x40xf32, #tpu.memory_space<vmem>>, vector<8x40xf32>
    %c0_56 = arith.constant 0 : index
    %c0_57 = arith.constant 0 : index
    %127 = vector.load %arg6[%c0_56, %c0_57] : memref<40x512xf32, #tpu.memory_space<vmem>>, vector<40x512xf32>
    %cst_58 = arith.constant dense<0.000000e+00> : vector<8x512xf32>
    %128 = tpu.matmul %126, %127, %cst_58 {dimension_numbers = #tpu.dot_dimension_numbers<[1], [0], [0], [1], [0, 0, 1, 1], [], []>} : vector<8x40xf32>, vector<40x512xf32>, vector<8x512xf32> -> vector<8x512xf32>
    %c0_59 = arith.constant 0 : index
    %c0_60 = arith.constant 0 : index
    %129 = vector.load %arg5[%c0_59, %c0_60] : memref<8x512xf32, #tpu.memory_space<vmem>>, vector<8x512xf32>
    tpu.vector_store %arg5[%c0_59, %c0_60], %128 {strides = array<i32>} : memref<8x512xf32, #tpu.memory_space<vmem>>, vector<8x512xf32>,
    return
  }
  func.func @transform_0(%arg0: i32) -> (i32, i32) {
    %c0_i32 = arith.constant 0 : i32
    %c0_i32_0 = arith.constant 0 : i32
    %c0_i32_1 = arith.constant 0 : i32
    return %c0_i32, %c0_i32_0 : i32, i32
  }
  func.func @transform_1(%arg0: i32) -> (i32, i32) {
    %c0_i32 = arith.constant 0 : i32
    %c0_i32_0 = arith.constant 0 : i32
    %c0_i32_1 = arith.constant 0 : i32
    return %c0_i32, %c0_i32_0 : i32, i32
  }
  func.func @transform_2(%arg0: i32) -> (i32, i32) {
    %c0_i32 = arith.constant 0 : i32
    %c0_i32_0 = arith.constant 0 : i32
    %c0_i32_1 = arith.constant 0 : i32
    return %c0_i32, %c0_i32_0 : i32, i32
  }
  func.func @transform_3(%arg0: i32) -> (i32, i32) {
    %c0_i32 = arith.constant 0 : i32
    %c0_i32_0 = arith.constant 0 : i32
    %c0_i32_1 = arith.constant 0 : i32
    return %c0_i32, %c0_i32_0 : i32, i32
  }
  func.func @transform_4(%arg0: i32) -> (i32, i32) {
    %c0_i32 = arith.constant 0 : i32
    %c0_i32_0 = arith.constant 0 : i32
    %c0_i32_1 = arith.constant 0 : i32
    return %c0_i32, %c0_i32_0 : i32, i32
  }
}

</mosaic_0001>

<llo_original>
// kernel: tpu_custom_call.1
$region0: #{tpu_custom_call.1}
  #allocation0 [shape = 'u32[]', space=smem, size = 0x4, offset = 0x4, fixed_abs, tag = 'smem constant byte address 0x4 - core index']
  #allocation1 [shape = 'u32[144,128]{1,0:T(1,128)}', space=vmem, size = 0x12000, scoped, tag = 'internal scratch']
  #allocation2 [shape = 'f32[40,512]{1,0:T(8,128)}', space=vmem, size = 0x14000, scoped, tag = 'scratch operand']
  %s0 = inlined_call_operand.hbm [shape: f32[8,40], index: 0, kind: input, shape index: {}]
  %s1 = inlined_call_operand.hbm [shape: f32[4,512], index: 1, kind: input, shape index: {}]
  %s2 = inlined_call_operand.hbm [shape: s32[4,512], index: 2, kind: input, shape index: {}]
  %s3 = inlined_call_operand.hbm [shape: s32[4,512], index: 3, kind: input, shape index: {}]
  %s4 = inlined_call_operand.hbm [shape: f32[8,512], index: 4, kind: output, shape index: {}]
  %s5 = sld [smem:[#allocation0]]
  $region42: #{tpu_custom_call.1} parent=0
    _
  %s7 = ssub.s32 1, %s5
  %s8 = scalar_select 0, %s7, %s5
  $region1: #{tpu_custom_call.1} parent=0
    #allocation3 [shape = 'u8[4096]{0}', space=vmem, size = 0x1000, scoped, tag = 'input window, operand 0, single buffered']
    #allocation4 [shape = 's32[1]{0}', space=sflag, size = 0x4, scoped, tag = 'scoped memory for tpu_custom_call.1']
    #allocation5 [shape = 's32[1]{0}', space=sflag, size = 0x4, scoped, tag = 'scoped memory for tpu_custom_call.1']
    #allocation6 [shape = 'u8[8192]{0}', space=vmem, size = 0x2000, scoped, tag = 'input window, operand 1, single buffered']
    #allocation7 [shape = 's32[1]{0}', space=sflag, size = 0x4, scoped, tag = 'scoped memory for tpu_custom_call.1']
    #allocation8 [shape = 'u8[8192]{0}', space=vmem, size = 0x2000, scoped, tag = 'input window, operand 2, single buffered']
    #allocation9 [shape = 'u8[8192]{0}', space=vmem, size = 0x2000, scoped, tag = 'input window, operand 3, single buffered']
    #allocation10 [shape = 's32[1]{0}', space=sflag, size = 0x4, scoped, tag = 'scoped memory for tpu_custom_call.1']
    #allocation11 [shape = 'u8[16384]{0}', space=vmem, size = 0x4000, scoped, tag = 'output window, operand 0, single buffered']
    %9 = vsyncpa [#allocation4], 0
    %10 = vsyncpa [#allocation7], 0
    %11 = vsyncpa [#allocation10], 0
    %12 = vsyncpa [#allocation5], 0
    // Predicated region
    $region2: #{tpu_custom_call.1} parent=1 // pred_check
      _
    $region3: #{tpu_custom_call.1} parent=1 // pred_check_branch
      %14 = sbr.rel (0) target = $region5
    $region4: #{tpu_custom_call.1} parent=1 // pred_region
      %s16 = ssub.s32 128, 128
      %17 = vsyncadd [#allocation4], %s16
      %s19 = sshll.u32 [#allocation3], 4
      %s20 = int_to_ptr.vmem [resolvable:$true] %s19
      %22 = dma.hbm_to_vmem [thread:$0]  %s0, 128, %s20, [#allocation4]
    $region5: #{tpu_custom_call.1} parent=1 // pred_fallthru
      _
    // Predicated region
    $region6: #{tpu_custom_call.1} parent=1 // pred_check
      _
    $region7: #{tpu_custom_call.1} parent=1 // pred_check_branch
      %24 = sbr.rel (0) target = $region9
    $region8: #{tpu_custom_call.1} parent=1 // pred_region
      %s26 = ssub.s32 256, 256
      %27 = vsyncadd [#allocation7], %s26
      %s29 = sshll.u32 [#allocation6], 4
      %s30 = int_to_ptr.vmem [resolvable:$true] %s29
      %32 = dma.hbm_to_vmem [thread:$0]  %s1, 256, %s30, [#allocation7]
    $region9: #{tpu_custom_call.1} parent=1 // pred_fallthru
      _
    // Predicated region
    $region10: #{tpu_custom_call.1} parent=1 // pred_check
      _
    $region11: #{tpu_custom_call.1} parent=1 // pred_check_branch
      %34 = sbr.rel (0) target = $region13
    $region12: #{tpu_custom_call.1} parent=1 // pred_region
      %s36 = ssub.s32 256, 256
      %37 = vsyncadd [#allocation7], %s36
      %s39 = sshll.u32 [#allocation8], 4
      %s40 = int_to_ptr.vmem [resolvable:$true] %s39
      %42 = dma.hbm_to_vmem [thread:$0]  %s2, 256, %s40, [#allocation7]
    $region13: #{tpu_custom_call.1} parent=1 // pred_fallthru
      _
    // Predicated region
    $region14: #{tpu_custom_call.1} parent=1 // pred_check
      _
    $region15: #{tpu_custom_call.1} parent=1 // pred_check_branch
      %44 = sbr.rel (0) target = $region17
    $region16: #{tpu_custom_call.1} parent=1 // pred_region
      %s46 = ssub.s32 256, 256
      %47 = vsyncadd [#allocation10], %s46
      %s49 = sshll.u32 [#allocation9], 4
      %s50 = int_to_ptr.vmem [resolvable:$true] %s49
      %52 = dma.hbm_to_vmem [thread:$0]  %s3, 256, %s50, [#allocation10]
    $region17: #{tpu_custom_call.1} parent=1 // pred_fallthru
      _
    // Predicated region
    $region18: #{tpu_custom_call.1} parent=1 // pred_check
      _
    $region19: #{tpu_custom_call.1} parent=1 // pred_check_branch
      %54 = sbr.rel (0) target = $region21
    $region20: #{tpu_custom_call.1} parent=1 // pred_region
      %55 = dma.done [#allocation4], 128
    $region21: #{tpu_custom_call.1} parent=1 // pred_fallthru
      _
    // Predicated region
    $region22: #{tpu_custom_call.1} parent=1 // pred_check
      _
    $region23: #{tpu_custom_call.1} parent=1 // pred_check_branch
      %57 = sbr.rel (0) target = $region25
    $region24: #{tpu_custom_call.1} parent=1 // pred_region
      %58 = dma.done [#allocation7], 256
    $region25: #{tpu_custom_call.1} parent=1 // pred_fallthru
      _
    // Predicated region
    $region26: #{tpu_custom_call.1} parent=1 // pred_check
      _
    $region27: #{tpu_custom_call.1} parent=1 // pred_check_branch
      %60 = sbr.rel (0) target = $region29
    $region28: #{tpu_custom_call.1} parent=1 // pred_region
      %61 = dma.done [#allocation7], 256
    $region29: #{tpu_custom_call.1} parent=1 // pred_fallthru
      _
    // Predicated region
    $region30: #{tpu_custom_call.1} parent=1 // pred_check
      _
    $region31: #{tpu_custom_call.1} parent=1 // pred_check_branch
      %63 = sbr.rel (0) target = $region33
    $region32: #{tpu_custom_call.1} parent=1 // pred_region
      %64 = dma.done [#allocation10], 256
    $region33: #{tpu_custom_call.1} parent=1 // pred_fallthru
      _
    %v65 = vld [vmem:[#allocation6] sm:$0xff]
    %v66 = vld [vmem:[#allocation6 + $0x8] sm:$0xff]
    %v67 = vld [vmem:[#allocation8] sm:$0xff]
    %v68 = vld [vmem:[#allocation8 + $0x8] sm:$0xff]
    %v69 = vld [vmem:[#allocation9] sm:$0xff]
    %v70 = vld [vmem:[#allocation9 + $0x8] sm:$0xff]
    %v73 = vcombine.high %v65, %v65
    %v74 = vcombine.high %v66, %v66
    %77 = vrot.lane.b32.xlu0 %v65, 17
    %v78 = vpop.permute.xlu0 %77
    %79 = vrot.lane.b32.xlu0 %v73, 17
    %v80 = vpop.permute.xlu0 %79
    %81 = vrot.lane.b32.xlu0 %v66, 17
    %v82 = vpop.permute.xlu0 %81
    %83 = vrot.lane.b32.xlu0 %v74, 17
    %v84 = vpop.permute.xlu0 %83
    %v85 = vlaneseq
    %v86 = vand.u32 %v85, 127
    %vm87 = vcmp.lt.s32.totalorder %v86, 17
    %v88 = vsel %vm87, %v82, %v84
    %v89 = vsel %vm87, %v80, %v82
    %v90 = vsel %vm87, %v78, %v80
    %v91 = vsel %vm87, %v84, %v78
    %vm92 = vcmp.ge.s32.totalorder %v67, 1
    %vm93 = vcmp.ge.s32.totalorder %v68, 1
    %vm94 = vcmp.lt.s32.totalorder %v67, 17
    %vm95 = vcmp.lt.s32.totalorder %v68, 17
    %vm96 = vmand %vm92, %vm94
    %vm97 = vmand %vm93, %vm95
    %vm98 = vcmp.ge.s32.totalorder %v69, 1
    %vm99 = vcmp.ge.s32.totalorder %v70, 1
    %vm100 = vmand %vm96, %vm98
    %vm101 = vmand %vm97, %vm99
    %vm102 = vcmp.lt.s32.totalorder %v69, 17
    %vm103 = vcmp.lt.s32.totalorder %v70, 17
    %vm104 = vmand %vm100, %vm102
    %vm105 = vmand %vm101, %vm103
    %v110 = vcombine.low %v91, %v90
    %v111 = vcombine.low %v89, %v88
    %v114 = vsel %vm104, %v110, 0.0
    %v115 = vsel %vm105, %v111, 0.0
    %v118 = vcombine.high %v114, %v114
    %v119 = vcombine.high %v115, %v115
    %122 = vst [vmem:[#allocation2] sm:$0xf] %v114
    %123 = vst [vmem:[#allocation2 + $0x8] sm:$0xf] %v118
    %124 = vst [vmem:[#allocation2 + $0x10] sm:$0xf] %v115
    %125 = vst [vmem:[#allocation2 + $0x18] sm:$0xf] %v119
    %126 = vrot.lane.b32.xlu0 %v65, 16
    %v127 = vpop.permute.xlu0 %126
    %128 = vrot.lane.b32.xlu0 %v73, 16
    %v129 = vpop.permute.xlu0 %128
    %130 = vrot.lane.b32.xlu0 %v66, 16
    %v131 = vpop.permute.xlu0 %130
    %132 = vrot.lane.b32.xlu0 %v74, 16
    %v133 = vpop.permute.xlu0 %132
    %vm134 = vcmp.lt.s32.totalorder %v86, 16
    %v135 = vsel %vm134, %v131, %v133
    %v136 = vsel %vm134, %v129, %v131
    %v137 = vsel %vm134, %v127, %v129
    %v138 = vsel %vm134, %v133, %v127
    %vm139 = vcmp.ge.s32.totalorder %v69, 0
    %vm140 = vcmp.ge.s32.totalorder %v70, 0
    %vm141 = vmand %vm96, %vm139
    %vm142 = vmand %vm97, %vm140
    %vm143 = vcmp.lt.s32.totalorder %v69, 16
    %vm144 = vcmp.lt.s32.totalorder %v70, 16
    %vm145 = vmand %vm141, %vm143
    %vm146 = vmand %vm142, %vm144
    %v151 = vcombine.low %v138, %v137
    %v152 = vcombine.low %v136, %v135
    %v155 = vsel %vm145, %v151, 0.0
    %v156 = vsel %vm146, %v152, 0.0
    %v159 = vcombine.low %v155, %v155
    %v160 = vcombine.low %v156, %v156
    %163 = vst [vmem:[#allocation2] sm:$0xf0] %v159
    %164 = vst [vmem:[#allocation2 + $0x8] sm:$0xf0] %v155
    %165 = vst [vmem:[#allocation2 + $0x10] sm:$0xf0] %v160
    %166 = vst [vmem:[#allocation2 + $0x18] sm:$0xf0] %v156
    %167 = vrot.lane.b32.xlu0 %v65, 15
    %v168 = vpop.permute.xlu0 %167
    %169 = vrot.lane.b32.xlu0 %v73, 15
    %v170 = vpop.permute.xlu0 %169
    %171 = vrot.lane.b32.xlu0 %v66, 15
    %v172 = vpop.permute.xlu0 %171
    %173 = vrot.lane.b32.xlu0 %v74, 15
    %v174 = vpop.permute.xlu0 %173
    %vm175 = vcmp.lt.s32.totalorder %v86, 15
    %v176 = vsel %vm175, %v172, %v174
    %v177 = vsel %vm175, %v170, %v172
    %v178 = vsel %vm175, %v168, %v170
    %v179 = vsel %vm175, %v174, %v168
    %vm180 = vcmp.ge.s32.totalorder %v69, 4294967295
    %vm181 = vcmp.ge.s32.totalorder %v70, 4294967295
    %vm182 = vmand %vm96, %vm180
    %vm183 = vmand %vm97, %vm181
    %vm184 = vcmp.lt.s32.totalorder %v69, 15
    %vm185 = vcmp.lt.s32.totalorder %v70, 15
    %vm186 = vmand %vm182, %vm184
    %vm187 = vmand %vm183, %vm185
    %v192 = vcombine.low %v179, %v178
    %v193 = vcombine.low %v177, %v176
    %v196 = vsel %vm186, %v192, 0.0
    %v197 = vsel %vm187, %v193, 0.0
    %v200 = vcombine.high %v196, %v196
    %v201 = vcombine.high %v197, %v197
    %204 = vst [vmem:[#allocation2 + $0x20] sm:$0xf] %v196
    %205 = vst [vmem:[#allocation2 + $0x28] sm:$0xf] %v200
    %206 = vst [vmem:[#allocation2 + $0x30] sm:$0xf] %v197
    %207 = vst [vmem:[#allocation2 + $0x38] sm:$0xf] %v201
    %208 = vrot.lane.b32.xlu0 %v65, 1
    %v209 = vpop.permute.xlu0 %208
    %210 = vrot.lane.b32.xlu0 %v73, 1
    %v211 = vpop.permute.xlu0 %210
    %212 = vrot.lane.b32.xlu0 %v66, 1
    %v213 = vpop.permute.xlu0 %212
    %214 = vrot.lane.b32.xlu0 %v74, 1
    %v215 = vpop.permute.xlu0 %214
    %vm216 = vcmp.lt.s32.totalorder %v86, 1
    %v217 = vsel %vm216, %v213, %v215
    %v218 = vsel %vm216, %v211, %v213
    %v219 = vsel %vm216, %v209, %v211
    %v220 = vsel %vm216, %v215, %v209
    %vm221 = vcmp.ge.s32.totalorder %v67, 0
    %vm222 = vcmp.ge.s32.totalorder %v68, 0
    %vm223 = vcmp.lt.s32.totalorder %v67, 16
    %vm224 = vcmp.lt.s32.totalorder %v68, 16
    %vm225 = vmand %vm221, %vm223
    %vm226 = vmand %vm222, %vm224
    %vm227 = vmand %vm225, %vm98
    %vm228 = vmand %vm226, %vm99
    %vm229 = vmand %vm227, %vm102
    %vm230 = vmand %vm228, %vm103
    %v235 = vcombine.low %v220, %v219
    %v236 = vcombine.low %v218, %v217
    %v239 = vsel %vm229, %v235, 0.0
    %v240 = vsel %vm230, %v236, 0.0
    %v243 = vcombine.low %v239, %v239
    %v244 = vcombine.low %v240, %v240
    %247 = vst [vmem:[#allocation2 + $0x20] sm:$0xf0] %v243
    %248 = vst [vmem:[#allocation2 + $0x28] sm:$0xf0] %v239
    %249 = vst [vmem:[#allocation2 + $0x30] sm:$0xf0] %v244
    %250 = vst [vmem:[#allocation2 + $0x38] sm:$0xf0] %v240
    %251 = vst [vmem:[#allocation2 + $0x40] sm:$0xf] %v65
    %252 = vst [vmem:[#allocation2 + $0x48] sm:$0xf] %v73
    %253 = vst [vmem:[#allocation2 + $0x50] sm:$0xf] %v66
    %254 = vst [vmem:[#allocation2 + $0x58] sm:$0xf] %v74
    %255 = vrot.lane.b32.xlu0 %v65, 127
    %v256 = vpop.permute.xlu0 %255
    %257 = vrot.lane.b32.xlu0 %v73, 127
    %v258 = vpop.permute.xlu0 %257
    %259 = vrot.lane.b32.xlu0 %v66, 127
    %v260 = vpop.permute.xlu0 %259
    %261 = vrot.lane.b32.xlu0 %v74, 127
    %v262 = vpop.permute.xlu0 %261
    %vm263 = vcmp.lt.s32.totalorder %v86, 127
    %v264 = vsel %vm263, %v260, %v262
    %v265 = vsel %vm263, %v258, %v260
    %v266 = vsel %vm263, %v256, %v258
    %v267 = vsel %vm263, %v262, %v256
    %vm268 = vmand %vm225, %vm180
    %vm269 = vmand %vm226, %vm181
    %vm270 = vmand %vm268, %vm184
    %vm271 = vmand %vm269, %vm185
    %v276 = vcombine.low %v266, %v265
    %v277 = vcombine.low %v264, %v267
    %v280 = vsel %vm270, %v276, 0.0
    %v281 = vsel %vm271, %v277, 0.0
    %v284 = vcombine.low %v280, %v280
    %v285 = vcombine.low %v281, %v281
    %288 = vst [vmem:[#allocation2 + $0x40] sm:$0xf0] %v284
    %289 = vst [vmem:[#allocation2 + $0x48] sm:$0xf0] %v280
    %290 = vst [vmem:[#allocation2 + $0x50] sm:$0xf0] %v285
    %291 = vst [vmem:[#allocation2 + $0x58] sm:$0xf0] %v281
    %292 = vrot.lane.b32.xlu0 %v65, 113
    %v293 = vpop.permute.xlu0 %292
    %294 = vrot.lane.b32.xlu0 %v73, 113
    %v295 = vpop.permute.xlu0 %294
    %296 = vrot.lane.b32.xlu0 %v66, 113
    %v297 = vpop.permute.xlu0 %296
    %298 = vrot.lane.b32.xlu0 %v74, 113
    %v299 = vpop.permute.xlu0 %298
    %vm300 = vcmp.lt.s32.totalorder %v86, 113
    %v301 = vsel %vm300, %v297, %v299
    %v302 = vsel %vm300, %v295, %v297
    %v303 = vsel %vm300, %v293, %v295
    %v304 = vsel %vm300, %v299, %v293
    %vm305 = vcmp.ge.s32.totalorder %v67, 4294967295
    %vm306 = vcmp.ge.s32.totalorder %v68, 4294967295
    %vm307 = vcmp.lt.s32.totalorder %v67, 15
    %vm308 = vcmp.lt.s32.totalorder %v68, 15
    %vm309 = vmand %vm305, %vm307
    %vm310 = vmand %vm306, %vm308
    %vm311 = vmand %vm309, %vm98
    %vm312 = vmand %vm310, %vm99
    %vm313 = vmand %vm311, %vm102
    %vm314 = vmand %vm312, %vm103
    %v319 = vcombine.low %v303, %v302
    %v320 = vcombine.low %v301, %v304
    %v323 = vsel %vm313, %v319, 0.0
    %v324 = vsel %vm314, %v320, 0.0
    %v327 = vcombine.high %v323, %v323
    %v328 = vcombine.high %v324, %v324
    %331 = vst [vmem:[#allocation2 + $0x60] sm:$0xf] %v323
    %332 = vst [vmem:[#allocation2 + $0x68] sm:$0xf] %v327
    %333 = vst [vmem:[#allocation2 + $0x70] sm:$0xf] %v324
    %334 = vst [vmem:[#allocation2 + $0x78] sm:$0xf] %v328
    %335 = vrot.lane.b32.xlu0 %v65, 112
    %v336 = vpop.permute.xlu0 %335
    %337 = vrot.lane.b32.xlu0 %v73, 112
    %v338 = vpop.permute.xlu0 %337
    %339 = vrot.lane.b32.xlu0 %v66, 112
    %v340 = vpop.permute.xlu0 %339
    %341 = vrot.lane.b32.xlu0 %v74, 112
    %v342 = vpop.permute.xlu0 %341
    %vm343 = vcmp.lt.s32.totalorder %v86, 112
    %v344 = vsel %vm343, %v340, %v342
    %v345 = vsel %vm343, %v338, %v340
    %v346 = vsel %vm343, %v336, %v338
    %v347 = vsel %vm343, %v342, %v336
    %vm348 = vmand %vm309, %vm139
    %vm349 = vmand %vm310, %vm140
    %vm350 = vmand %vm348, %vm143
    %vm351 = vmand %vm349, %vm144
    %v356 = vcombine.low %v346, %v345
    %v357 = vcombine.low %v344, %v347
    %v360 = vsel %vm350, %v356, 0.0
    %v361 = vsel %vm351, %v357, 0.0
    %v364 = vcombine.low %v360, %v360
    %v365 = vcombine.low %v361, %v361
    %368 = vst [vmem:[#allocation2 + $0x60] sm:$0xf0] %v364
    %369 = vst [vmem:[#allocation2 + $0x68] sm:$0xf0] %v360
    %370 = vst [vmem:[#allocation2 + $0x70] sm:$0xf0] %v365
    %371 = vst [vmem:[#allocation2 + $0x78] sm:$0xf0] %v361
    %372 = vrot.lane.b32.xlu0 %v65, 111
    %v373 = vpop.permute.xlu0 %372
    %374 = vrot.lane.b32.xlu0 %v73, 111
    %v375 = vpop.permute.xlu0 %374
    %376 = vrot.lane.b32.xlu0 %v66, 111
    %v377 = vpop.permute.xlu0 %376
    %378 = vrot.lane.b32.xlu0 %v74, 111
    %v379 = vpop.permute.xlu0 %378
    %vm380 = vcmp.lt.s32.totalorder %v86, 111
    %v381 = vsel %vm380, %v377, %v379
    %v382 = vsel %vm380, %v375, %v377
    %v383 = vsel %vm380, %v373, %v375
    %v384 = vsel %vm380, %v379, %v373
    %vm385 = vmand %vm309, %vm180
    %vm386 = vmand %vm310, %vm181
    %vm387 = vmand %vm385, %vm184
    %vm388 = vmand %vm386, %vm185
    %v393 = vcombine.low %v383, %v382
    %v394 = vcombine.low %v381, %v384
    %v397 = vsel %vm387, %v393, 0.0
    %v398 = vsel %vm388, %v394, 0.0
    %v401 = vcombine.high %v397, %v397
    %v402 = vcombine.high %v398, %v398
    %405 = vst [vmem:[#allocation2 + $0x80] sm:$0xf] %v397
    %406 = vst [vmem:[#allocation2 + $0x88] sm:$0xf] %v401
    %407 = vst [vmem:[#allocation2 + $0x90] sm:$0xf] %v398
    %408 = vst [vmem:[#allocation2 + $0x98] sm:$0xf] %v402
    %409 = vst [vmem:[#allocation2 + $0x80] sm:$0xf0] 0.0
    %410 = vst [vmem:[#allocation2 + $0x88] sm:$0xf0] 0.0
    %411 = vst [vmem:[#allocation2 + $0x90] sm:$0xf0] 0.0
    %412 = vst [vmem:[#allocation2 + $0x98] sm:$0xf0] 0.0
    %v413 = vld [vmem:[#allocation3] sm:$0xff]
    %v414 = vld [vmem:[#allocation2] sm:$0xff]
    %v415 = vld [vmem:[#allocation2 + $0x8] sm:$0xff]
    %v416 = vld [vmem:[#allocation2 + $0x10] sm:$0xff]
    %v417 = vld [vmem:[#allocation2 + $0x18] sm:$0xff]
    %v418 = vld [vmem:[#allocation2 + $0x20] sm:$0xff]
    %v419 = vld [vmem:[#allocation2 + $0x28] sm:$0xff]
    %v420 = vld [vmem:[#allocation2 + $0x30] sm:$0xff]
    %v421 = vld [vmem:[#allocation2 + $0x38] sm:$0xff]
    %v422 = vld [vmem:[#allocation2 + $0x40] sm:$0xff]
    %v423 = vld [vmem:[#allocation2 + $0x48] sm:$0xff]
    %v424 = vld [vmem:[#allocation2 + $0x50] sm:$0xff]
    %v425 = vld [vmem:[#allocation2 + $0x58] sm:$0xff]
    %v426 = vld [vmem:[#allocation2 + $0x60] sm:$0xff]
    %v427 = vld [vmem:[#allocation2 + $0x68] sm:$0xff]
    %v428 = vld [vmem:[#allocation2 + $0x70] sm:$0xff]
    %v429 = vld [vmem:[#allocation2 + $0x78] sm:$0xff]
    %v430 = vld [vmem:[#allocation2 + $0x80] sm:$0xff]
    %v431 = vld [vmem:[#allocation2 + $0x88] sm:$0xff]
    %v432 = vld [vmem:[#allocation2 + $0x90] sm:$0xff]
    %v433 = vld [vmem:[#allocation2 + $0x98] sm:$0xff]
    %vm434 = vcmask 326656
    %v436 = vsel %vm434, %v413, 0
    %438 = vmatprep.subr.mxu0 %v415
    %439 = vmatpush1.msra.mxu0 %v414
    %440 = vmatprep.subr.mxu0 %v419
    %441 = vmatpush1.msra.mxu0 %v418
    %442 = vmatprep.subr.mxu0 %v423
    %443 = vmatpush1.msra.mxu0 %v422
    %444 = vmatprep.subr.mxu0 %v427
    %445 = vmatpush1.msra.mxu0 %v426
    %446 = vmatprep.subr.mxu0 %v431
    %447 = vmatpush1.msra.mxu0 %v430
    %448 = vmatprep.subr.mxu0 0.0
    %449 = vmatpush1.msra.mxu0 0.0
    %450 = vmatprep.subr.mxu0 0.0
    %451 = vmatpush1.msra.mxu0 0.0
    %452 = vmatprep.subr.mxu0 0.0
    %453 = vmatpush1.msra.mxu0 0.0
    %454 = vmatprep.subr.mxu0 0.0
    %455 = vmatpush1.msra.mxu0 0.0
    %456 = vmatprep.subr.mxu0 0.0
    %457 = vmatpush1.msra.mxu0 0.0
    %458 = vmatprep.subr.mxu0 0.0
    %459 = vmatpush1.msra.mxu0 0.0
    %460 = vmatprep.subr.mxu0 0.0
    %461 = vmatpush1.msra.mxu0 0.0
    %462 = vmatprep.subr.mxu0 0.0
    %463 = vmatpush1.msra.mxu0 0.0
    %464 = vmatprep.subr.mxu0 0.0
    %465 = vmatpush1.msra.mxu0 0.0
    %466 = vmatprep.subr.mxu0 0.0
    %467 = vmatpush1.msra.mxu0 0.0
    %468 = vmatprep.subr.mxu0 0.0
    %469 = vmatpush1.msra.mxu0 0.0
    %470 = vmatprep.subr.mxu0 0.0
    %471 = vmatpush1.msra.mxu0 0.0
    %472 = vmatprep.subr.mxu0 0.0
    %473 = vmatpush1.msra.mxu0 0.0
    %474 = vmatprep.subr.mxu0 0.0
    %475 = vmatpush1.msra.mxu0 0.0
    %476 = vmatprep.subr.mxu0 0.0
    %477 = vmatpush1.msra.mxu0 0.0
    %478 = vmatprep.subr.mxu0 0.0
    %479 = vmatpush1.msra.mxu0 0.0
    %480 = vmatprep.subr.mxu0 0.0
    %481 = vmatpush1.msra.mxu0 0.0
    %482 = vmatprep.subr.mxu0 0.0
    %483 = vmatpush1.msra.mxu0 0.0
    %484 = vmatprep.subr.mxu0 0.0
    %485 = vmatpush1.msra.mxu0 0.0
    %486 = vmatprep.subr.mxu0 0.0
    %487 = vmatpush1.msra.mxu0 0.0
    %488 = vmatprep.subr.mxu0 0.0
    %489 = vmatpush1.msra.mxu0 0.0
    %490 = vmatprep.subr.mxu0 0.0
    %491 = vmatpush1.msra.mxu0 0.0
    %492 = vmatprep.subr.mxu0 0.0
    %493 = vmatpush1.msra.mxu0 0.0
    %494 = vmatprep.subr.mxu0 0.0
    %495 = vmatpush1.msra.mxu0 0.0
    %496 = vmatprep.subr.mxu0 0.0
    %497 = vmatpush1.msra.mxu0 0.0
    %498 = vmatprep.subr.mxu0 0.0
    %499 = vmatpush1.msra.mxu0 0.0
    %500 = vmatprep.subr.mxu0 0.0
    %501 = vmatpush1.msra.mxu0 0.0
    %502 = vmatprep.mubr.f32.mxu0 0.0
    %503 = vmatmul.mubr.f32.gmra.mrb[0].mxu0 %v436
    %v504 = vpop.f32.mrb[0].mxu0
    %v505 = vadd.f32 0.0, %v504
    %v506 = vpop.f32.mrb[0].mxu0
    %v507 = vadd.f32 0.0, %v506
    %508 = vdwg.mxu0
    %509 = vmatprep.subr.mxu0 %v417
    %510 = vmatpush1.msra.mxu0 %v416
    %511 = vmatprep.subr.mxu0 %v421
    %512 = vmatpush1.msra.mxu0 %v420
    %513 = vmatprep.subr.mxu0 %v425
    %514 = vmatpush1.msra.mxu0 %v424
    %515 = vmatprep.subr.mxu0 %v429
    %516 = vmatpush1.msra.mxu0 %v428
    %517 = vmatprep.subr.mxu0 %v433
    %518 = vmatpush1.msra.mxu0 %v432
    %519 = vmatprep.subr.mxu0 0.0
    %520 = vmatpush1.msra.mxu0 0.0
    %521 = vmatprep.subr.mxu0 0.0
    %522 = vmatpush1.msra.mxu0 0.0
    %523 = vmatprep.subr.mxu0 0.0
    %524 = vmatpush1.msra.mxu0 0.0
    %525 = vmatprep.subr.mxu0 0.0
    %526 = vmatpush1.msra.mxu0 0.0
    %527 = vmatprep.subr.mxu0 0.0
    %528 = vmatpush1.msra.mxu0 0.0
    %529 = vmatprep.subr.mxu0 0.0
    %530 = vmatpush1.msra.mxu0 0.0
    %531 = vmatprep.subr.mxu0 0.0
    %532 = vmatpush1.msra.mxu0 0.0
    %533 = vmatprep.subr.mxu0 0.0
    %534 = vmatpush1.msra.mxu0 0.0
    %535 = vmatprep.subr.mxu0 0.0
    %536 = vmatpush1.msra.mxu0 0.0
    %537 = vmatprep.subr.mxu0 0.0
    %538 = vmatpush1.msra.mxu0 0.0
    %539 = vmatprep.subr.mxu0 0.0
    %540 = vmatpush1.msra.mxu0 0.0
    %541 = vmatprep.subr.mxu0 0.0
    %542 = vmatpush1.msra.mxu0 0.0
    %543 = vmatprep.subr.mxu0 0.0
    %544 = vmatpush1.msra.mxu0 0.0
    %545 = vmatprep.subr.mxu0 0.0
    %546 = vmatpush1.msra.mxu0 0.0
    %547 = vmatprep.subr.mxu0 0.0
    %548 = vmatpush1.msra.mxu0 0.0
    %549 = vmatprep.subr.mxu0 0.0
    %550 = vmatpush1.msra.mxu0 0.0
    %551 = vmatprep.subr.mxu0 0.0
    %552 = vmatpush1.msra.mxu0 0.0
    %553 = vmatprep.subr.mxu0 0.0
    %554 = vmatpush1.msra.mxu0 0.0
    %555 = vmatprep.subr.mxu0 0.0
    %556 = vmatpush1.msra.mxu0 0.0
    %557 = vmatprep.subr.mxu0 0.0
    %558 = vmatpush1.msra.mxu0 0.0
    %559 = vmatprep.subr.mxu0 0.0
    %560 = vmatpush1.msra.mxu0 0.0
    %561 = vmatprep.subr.mxu0 0.0
    %562 = vmatpush1.msra.mxu0 0.0
    %563 = vmatprep.subr.mxu0 0.0
    %564 = vmatpush1.msra.mxu0 0.0
    %565 = vmatprep.subr.mxu0 0.0
    %566 = vmatpush1.msra.mxu0 0.0
    %567 = vmatprep.subr.mxu0 0.0
    %568 = vmatpush1.msra.mxu0 0.0
    %569 = vmatprep.subr.mxu0 0.0
    %570 = vmatpush1.msra.mxu0 0.0
    %571 = vmatprep.subr.mxu0 0.0
    %572 = vmatpush1.msra.mxu0 0.0
    %573 = vmatprep.mubr.f32.mxu0 0.0
    %574 = vmatmul.mubr.f32.gmra.mrb[0].mxu0 %v436
    %v575 = vpop.f32.mrb[0].mxu0
    %v576 = vadd.f32 0.0, %v575
    %v577 = vpop.f32.mrb[0].mxu0
    %v578 = vadd.f32 0.0, %v577
    %579 = vdwg.mxu0
    %580 = vst [vmem:[#allocation11] sm:$0xff] %v505
    %581 = vst [vmem:[#allocation11 + $0x8] sm:$0xff] %v507
    %582 = vst [vmem:[#allocation11 + $0x10] sm:$0xff] %v576
    %583 = vst [vmem:[#allocation11 + $0x18] sm:$0xff] %v578
    // Predicated region
    $region34: #{tpu_custom_call.1} parent=1 // pred_check
      _
    $region35: #{tpu_custom_call.1} parent=1 // pred_check_branch
      %585 = sbr.rel (0) target = $region37
    $region36: #{tpu_custom_call.1} parent=1 // pred_region
      %s587 = ssub.s32 512, 512
      %588 = vsyncadd [#allocation5], %s587
      %s590 = sshll.u32 [#allocation11], 4
      %s591 = int_to_ptr.vmem [resolvable:$true] %s590
      %593 = dma.vmem_to_hbm [thread:$0]  %s591, 512, %s4, [#allocation5]
    $region37: #{tpu_custom_call.1} parent=1 // pred_fallthru
      _
    // Predicated region
    $region38: #{tpu_custom_call.1} parent=1 // pred_check
      _
    $region39: #{tpu_custom_call.1} parent=1 // pred_check_branch
      %595 = sbr.rel (0) target = $region41
    $region40: #{tpu_custom_call.1} parent=1 // pred_region
      %596 = dma.done [#allocation5], 512
    $region41: #{tpu_custom_call.1} parent=1 // pred_fallthru
      _
    %597 = vsyncpa [#allocation4], 1
    %598 = vsyncpa [#allocation7], 1
    %599 = vsyncpa [#allocation10], 1
    %600 = vsyncpa [#allocation5], 1

</llo_original>
